<compile_context>
chip_gen: v6e
topology: v6e:2x2x1
jax: 0.10.0
libtpu: 0.0.40
codegen_flags: <defaults>
</compile_context>

<pallas_src>
import functools

import jax
import jax.numpy as jnp
from jax.experimental import pallas as pl
from jax.experimental.pallas import tpu as pltpu

LANE = 128
SUBLANE = 8


def _round_up(n, m):
    return ((n + m - 1) // m) * m


# ----------------------------------------------------------------------------- kernel
def vae_forward_kernel(
    x_ref, eps_ref,
    w1_ref, b1_ref,
    wh_ref, bh_ref,
    w2_ref, b2_ref,
    w3_ref, b3_ref,
    xrec_ref, musig_ref,
    *, z_dim,
):
    f32 = jnp.float32
    bf16 = jnp.bfloat16
    zp = eps_ref.shape[-1]          # packed mu|sigma slab width (lane multiple)

    # encode: h = relu(x @ W1 + b1)   (bf16 x bf16 MXU, f32 accumulate)
    h = jnp.dot(x_ref[...], w1_ref[...], preferred_element_type=f32) + b1_ref[...]
    h = jnp.maximum(h, 0.0)

    # packed mu|sigma head: lanes [0, z_dim) = mu, [z_dim, 2*z_dim) = sigma, rest zero
    heads = jnp.dot(h.astype(bf16), wh_ref[...], preferred_element_type=f32) + bh_ref[...]

    # reparameterization: z = mu + sigma * eps
    # Rotate sigma lanes down onto the mu lanes; eps is zero outside [0, z_dim) and
    # the decoder weight rows >= z_dim are zero, so any junk in z lanes >= z_dim
    # never reaches h2.
    sigma_aligned = pltpu.roll(heads, shift=zp - z_dim, axis=1)
    z = heads + sigma_aligned * eps_ref[...].astype(f32)

    # decode: h2 = relu(z @ W2 + b2); x_rec = sigmoid(h2 @ W3 + b3)
    h2 = jnp.dot(z.astype(bf16), w2_ref[...], preferred_element_type=f32) + b2_ref[...]
    h2 = jnp.maximum(h2, 0.0)
    logits = jnp.dot(h2.astype(bf16), w3_ref[...], preferred_element_type=f32) + b3_ref[...]

    xrec_ref[...] = jax.nn.sigmoid(logits)
    musig_ref[...] = heads          # packed lane-dense (TB, Zp) slab; wrapper slices mu/sigma


# ----------------------------------------------------------------------------- wrapper
def vae_forward(x, eps, padded_params, dims):
    """x: (B, input_dim) f32, eps: (B, z_dim) f32, padded_params from prepare_params()."""
    input_dim, h_dim, z_dim = dims
    B = x.shape[0]
    Dp = _round_up(input_dim, LANE)
    Hp = _round_up(h_dim, LANE)
    Zp = _round_up(2 * z_dim, LANE)   # packed mu|sigma slab width (also decoder K dim)

    # batch tile: sublane multiple, up to 512 rows per grid step (mem-bound sweet spot)
    TB = min(512, _round_up(B, SUBLANE))
    Bp = _round_up(B, TB)
    nb = Bp // TB
    # v7x megacore: if the whole batch fits one tile, split it so both TCs get work
    if nb == 1 and Bp >= 2 * SUBLANE:
        TB = _round_up(pl.cdiv(Bp, 2), SUBLANE)
        Bp = _round_up(B, TB)
        nb = Bp // TB

    # streamed activations in bf16 (halves the dominant read-side HBM traffic)
    xp = jnp.pad(x, ((0, Bp - B), (0, Dp - input_dim))).astype(jnp.bfloat16)
    epsp = jnp.pad(eps, ((0, Bp - B), (0, Zp - z_dim))).astype(jnp.bfloat16)

    def batch_spec(cols):                     # tiled over the batch grid axis
        return pl.BlockSpec((TB, cols), lambda i: (i, 0))

    def resident(rows, cols):                 # constant index_map -> DMA'd once, stays in VMEM
        return pl.BlockSpec((rows, cols), lambda i: (0, 0))

    p = padded_params
    grid_spec = pltpu.PrefetchScalarGridSpec(
        num_scalar_prefetch=0,
        grid=(nb,),
        in_specs=[
            batch_spec(Dp),                   # x (bf16)
            batch_spec(Zp),                   # eps (bf16)
            resident(Dp, Hp),                 # w1 (bf16)
            resident(1, Hp),                  # b1 (f32)
            resident(Hp, Zp),                 # packed mu|sigma weight (bf16)
            resident(1, Zp),                  # packed mu|sigma bias (f32)
            resident(Zp, Hp),                 # w2 (bf16)
            resident(1, Hp),                  # b2 (f32)
            resident(Hp, Dp),                 # w3 (bf16)
            resident(1, Dp),                  # b3 (f32)
        ],
        out_specs=(
            batch_spec(Dp),                   # x_reconstructed (f32)
            batch_spec(Zp),                   # packed mu|sigma slab (f32, lane-dense)
        ),
    )

    # advisory cost estimate so XLA can overlap this call with surrounding ops
    flops = 2 * B * (input_dim * h_dim + h_dim * 2 * z_dim + z_dim * h_dim + h_dim * input_dim)
    weight_bytes = 2 * (Dp * Hp + Hp * Zp + Zp * Hp + Hp * Dp)       # bf16 weights
    bias_bytes = 4 * (2 * Hp + Zp + Dp)
    act_bytes = 2 * Bp * (Dp + Zp) + 4 * Bp * (Dp + Zp)               # bf16 in, f32 out
    cost = pl.CostEstimate(
        flops=flops,
        transcendentals=B * input_dim,        # sigmoid on the reconstruction
        bytes_accessed=weight_bytes + bias_bytes + act_bytes,
    )

    xrec_p, musig_p = pl.pallas_call(
        functools.partial(vae_forward_kernel, z_dim=z_dim),
        out_shape=(
            jax.ShapeDtypeStruct((Bp, Dp), jnp.float32),
            jax.ShapeDtypeStruct((Bp, Zp), jnp.float32),
        ),
        grid_spec=grid_spec,
        compiler_params=pltpu.CompilerParams(
            dimension_semantics=("parallel",)),   # shard batch tiles across TCs (v7x)
        cost_estimate=cost,
    )(
        xp, epsp,
        p["w1"], p["b1"],
        p["w_heads"], p["b_heads"],
        p["w2"], p["b2"],
        p["w3"], p["b3"],
    )

    x_rec = xrec_p[:B, :input_dim]
    mu = musig_p[:B, :z_dim]
    sigma = musig_p[:B, z_dim:2 * z_dim]
    return x_rec, mu, sigma


# ----------------------------------------------------------------------------- params
def init_params(key, input_dim, h_dim=200, z_dim=20):
    """Logical (unpadded, f32) params mimicking nn.Linear's U(-1/sqrt(fan_in), ...)."""
    def linear(k, fan_in, fan_out):
        kw, kb = jax.random.split(k)
        bound = 1.0 / jnp.sqrt(float(fan_in))
        w = jax.random.uniform(kw, (fan_in, fan_out), jnp.float32, -bound, bound)
        b = jax.random.uniform(kb, (1, fan_out), jnp.float32, -bound, bound)
        return w, b

    k1, k2, k3, k4, k5 = jax.random.split(key, 5)
    w1, b1 = linear(k1, input_dim, h_dim)        # img_2hid
    wmu, bmu = linear(k2, h_dim, z_dim)          # hidden_2mu
    wsig, bsig = linear(k3, h_dim, z_dim)        # hidden_2sigma
    w2, b2 = linear(k4, z_dim, h_dim)            # z_2hid
    w3, b3 = linear(k5, h_dim, input_dim)        # hid_2img
    return dict(w1=w1, b1=b1, wmu=wmu, bmu=bmu, wsig=wsig, bsig=bsig,
                w2=w2, b2=b2, w3=w3, b3=b3)


def prepare_params(params, input_dim, h_dim, z_dim):
    """Zero-pad feature dims to lane multiples, pack mu|sigma head, cast weights to bf16."""
    Dp = _round_up(input_dim, LANE)
    Hp = _round_up(h_dim, LANE)
    Zp = _round_up(2 * z_dim, LANE)

    def pad2(a, rows, cols):
        return jnp.pad(a, ((0, rows - a.shape[0]), (0, cols - a.shape[1])))

    w1 = pad2(params["w1"], Dp, Hp).astype(jnp.bfloat16)
    b1 = pad2(params["b1"], 1, Hp)
    # packed head: columns [0, z_dim) = mu, [z_dim, 2*z_dim) = sigma, rest zero
    w_heads = pad2(jnp.concatenate([params["wmu"], params["wsig"]], axis=1),
                   Hp, Zp).astype(jnp.bfloat16)
    b_heads = pad2(jnp.concatenate([params["bmu"], params["bsig"]], axis=1), 1, Zp)
    w2 = pad2(params["w2"], Zp, Hp).astype(jnp.bfloat16)
    b2 = pad2(params["b2"], 1, Hp)
    w3 = pad2(params["w3"], Hp, Dp).astype(jnp.bfloat16)
    b3 = pad2(params["b3"], 1, Dp)
    return dict(w1=w1, b1=b1, w_heads=w_heads, b_heads=b_heads,
                w2=w2, b2=b2, w3=w3, b3=b3)


# ----------------------------------------------------------------------------- reference
def vae_forward_ref(x, eps, p):
    """Pure-JAX reference with the SAME numerics as the kernel:
    bf16 matmul operands, f32 accumulation, f32 elementwise, bf16-streamed eps."""
    bf16, f32 = jnp.bfloat16, jnp.float32

    def mm(a, w):
        return jnp.dot(a.astype(bf16), w.astype(bf16), preferred_element_type=f32)

    eps = eps.astype(bf16).astype(f32)           # kernel streams eps in bf16
    h = jax.nn.relu(mm(x, p["w1"]) + p["b1"])
    mu = mm(h, p["wmu"]) + p["bmu"]
    sigma = mm(h, p["wsig"]) + p["bsig"]
    z = mu + sigma * eps
    h2 = jax.nn.relu(mm(z, p["w2"]) + p["b2"])
    xrec = jax.nn.sigmoid(mm(h2, p["w3"]) + p["b3"])
    return xrec, mu, sigma


if __name__ == "__main__":
    # small, module-consistent shapes: batch=2, flattened 16x16 image -> input_dim=256
    B, INPUT_DIM, H_DIM, Z_DIM = 2, 256, 200, 20

    key = jax.random.PRNGKey(0)
    kx, keps, kp = jax.random.split(key, 3)

    x = jax.random.uniform(kx, (B, INPUT_DIM), jnp.float32)        # "image" input
    eps = jax.random.normal(keps, (B, Z_DIM), jnp.float32)         # ~ torch.randn_like(sigma)
    logical_params = init_params(kp, INPUT_DIM, H_DIM, Z_DIM)
    padded_params = prepare_params(logical_params, INPUT_DIM, H_DIM, Z_DIM)

    x_rec, mu, sigma = vae_forward(x, eps, padded_params, (INPUT_DIM, H_DIM, Z_DIM))
    jax.block_until_ready((x_rec, mu, sigma))

    # verify against pure-JAX reference using matching bf16-operand numerics
    x_rec_r, mu_r, sigma_r = vae_forward_ref(x, eps, logical_params)
    assert jnp.allclose(x_rec, x_rec_r, rtol=2e-3, atol=2e-3)
    assert jnp.allclose(mu, mu_r, rtol=2e-3, atol=2e-3)
    assert jnp.allclose(sigma, sigma_r, rtol=2e-3, atol=2e-3)
    assert x_rec.shape == (B, INPUT_DIM) and mu.shape == (B, Z_DIM) and sigma.shape == (B, Z_DIM)

    print("KERNEL_OK")
</pallas_src>

<mosaic_0001>
module attributes {stable_mosaic.version = 11 : i64} {
  func.func @vae_forward_kernel(%arg0: i32, %arg1: memref<8x256xbf16, #tpu.memory_space<vmem>>, %arg2: memref<8x128xbf16, #tpu.memory_space<vmem>>, %arg3: memref<256x256xbf16, #tpu.memory_space<vmem>>, %arg4: memref<1x256xf32, #tpu.memory_space<vmem>>, %arg5: memref<256x128xbf16, #tpu.memory_space<vmem>>, %arg6: memref<1x128xf32, #tpu.memory_space<vmem>>, %arg7: memref<128x256xbf16, #tpu.memory_space<vmem>>, %arg8: memref<1x256xf32, #tpu.memory_space<vmem>>, %arg9: memref<256x256xbf16, #tpu.memory_space<vmem>>, %arg10: memref<1x256xf32, #tpu.memory_space<vmem>>, %arg11: memref<8x256xf32, #tpu.memory_space<vmem>>, %arg12: memref<8x128xf32, #tpu.memory_space<vmem>>) attributes {dimension_semantics = [#tpu.dimension_semantics<parallel>], iteration_bounds = array<i64: 1>, scalar_prefetch = 0 : i64, scratch_operands = 0 : i64, tpu.core_type = #tpu.core_type<tc>, window_params = [{transform_indices = @transform_0, window_bounds = array<i64: 8, 256>}, {transform_indices = @transform_1, window_bounds = array<i64: 8, 128>}, {pipeline_mode = #tpu.pipeline_mode<synchronous>, transform_indices = @transform_2, window_bounds = array<i64: 256, 256>}, {pipeline_mode = #tpu.pipeline_mode<synchronous>, transform_indices = @transform_3, window_bounds = array<i64: 1, 256>}, {pipeline_mode = #tpu.pipeline_mode<synchronous>, transform_indices = @transform_4, window_bounds = array<i64: 256, 128>}, {pipeline_mode = #tpu.pipeline_mode<synchronous>, transform_indices = @transform_5, window_bounds = array<i64: 1, 128>}, {pipeline_mode = #tpu.pipeline_mode<synchronous>, transform_indices = @transform_6, window_bounds = array<i64: 128, 256>}, {pipeline_mode = #tpu.pipeline_mode<synchronous>, transform_indices = @transform_7, window_bounds = array<i64: 1, 256>}, {pipeline_mode = #tpu.pipeline_mode<synchronous>, transform_indices = @transform_8, window_bounds = array<i64: 256, 256>}, {pipeline_mode = #tpu.pipeline_mode<synchronous>, transform_indices = @transform_9, window_bounds = array<i64: 1, 256>}, {transform_indices = @transform_10, window_bounds = array<i64: 8, 256>}, {transform_indices = @transform_11, window_bounds = array<i64: 8, 128>}]} {
    %c0 = arith.constant 0 : index
    %c0_0 = arith.constant 0 : index
    %0 = vector.load %arg1[%c0, %c0_0] : memref<8x256xbf16, #tpu.memory_space<vmem>>, vector<8x256xbf16>
    %c0_1 = arith.constant 0 : index
    %c0_2 = arith.constant 0 : index
    %1 = vector.load %arg3[%c0_1, %c0_2] : memref<256x256xbf16, #tpu.memory_space<vmem>>, vector<256x256xbf16>
    %cst = arith.constant dense<0.000000e+00> : vector<8x256xf32>
    %2 = tpu.matmul %0, %1, %cst {dimension_numbers = #tpu.dot_dimension_numbers<[1], [0], [0], [1], [0, 0, 1, 1], [], []>} : vector<8x256xbf16>, vector<256x256xbf16>, vector<8x256xf32> -> vector<8x256xf32>
    %c0_3 = arith.constant 0 : index
    %c0_4 = arith.constant 0 : index
    %3 = vector.load %arg4[%c0_3, %c0_4] : memref<1x256xf32, #tpu.memory_space<vmem>>, vector<1x256xf32>
    %4 = vector.broadcast %3 : vector<1x256xf32> to vector<8x256xf32>
    %5 = arith.addf %2, %4 : vector<8x256xf32>
    %cst_5 = arith.constant 0.000000e+00 : f32
    %6 = vector.broadcast %cst_5 : f32 to vector<8x256xf32>
    %7 = arith.maximumf %5, %6 : vector<8x256xf32>
    %8 = arith.truncf %7 : vector<8x256xf32> to vector<8x256xbf16>
    %c0_6 = arith.constant 0 : index
    %c0_7 = arith.constant 0 : index
    %9 = vector.load %arg5[%c0_6, %c0_7] : memref<256x128xbf16, #tpu.memory_space<vmem>>, vector<256x128xbf16>
    %cst_8 = arith.constant dense<0.000000e+00> : vector<8x128xf32>
    %10 = tpu.matmul %8, %9, %cst_8 {dimension_numbers = #tpu.dot_dimension_numbers<[1], [0], [0], [1], [0, 0, 1, 1], [], []>} : vector<8x256xbf16>, vector<256x128xbf16>, vector<8x128xf32> -> vector<8x128xf32>
    %c0_9 = arith.constant 0 : index
    %c0_10 = arith.constant 0 : index
    %11 = vector.load %arg6[%c0_9, %c0_10] : memref<1x128xf32, #tpu.memory_space<vmem>>, vector<1x128xf32>
    %12 = vector.broadcast %11 : vector<1x128xf32> to vector<8x128xf32>
    %13 = arith.addf %10, %12 : vector<8x128xf32>
    %c108_i32 = arith.constant 108 : i32
    %14 = tpu.dynamic_rotate %13 by %c108_i32 dim 1 : vector<8x128xf32>, i32 -> vector<8x128xf32>
    %c0_11 = arith.constant 0 : index
    %c0_12 = arith.constant 0 : index
    %15 = vector.load %arg2[%c0_11, %c0_12] : memref<8x128xbf16, #tpu.memory_space<vmem>>, vector<8x128xbf16>
    %16 = arith.extf %15 : vector<8x128xbf16> to vector<8x128xf32>
    %17 = arith.mulf %14, %16 : vector<8x128xf32>
    %18 = arith.addf %13, %17 : vector<8x128xf32>
    %19 = arith.truncf %18 : vector<8x128xf32> to vector<8x128xbf16>
    %c0_13 = arith.constant 0 : index
    %c0_14 = arith.constant 0 : index
    %20 = vector.load %arg7[%c0_13, %c0_14] : memref<128x256xbf16, #tpu.memory_space<vmem>>, vector<128x256xbf16>
    %cst_15 = arith.constant dense<0.000000e+00> : vector<8x256xf32>
    %21 = tpu.matmul %19, %20, %cst_15 {dimension_numbers = #tpu.dot_dimension_numbers<[1], [0], [0], [1], [0, 0, 1, 1], [], []>} : vector<8x128xbf16>, vector<128x256xbf16>, vector<8x256xf32> -> vector<8x256xf32>
    %c0_16 = arith.constant 0 : index
    %c0_17 = arith.constant 0 : index
    %22 = vector.load %arg8[%c0_16, %c0_17] : memref<1x256xf32, #tpu.memory_space<vmem>>, vector<1x256xf32>
    %23 = vector.broadcast %22 : vector<1x256xf32> to vector<8x256xf32>
    %24 = arith.addf %21, %23 : vector<8x256xf32>
    %cst_18 = arith.constant 0.000000e+00 : f32
    %25 = vector.broadcast %cst_18 : f32 to vector<8x256xf32>
    %26 = arith.maximumf %24, %25 : vector<8x256xf32>
    %27 = arith.truncf %26 : vector<8x256xf32> to vector<8x256xbf16>
    %c0_19 = arith.constant 0 : index
    %c0_20 = arith.constant 0 : index
    %28 = vector.load %arg9[%c0_19, %c0_20] : memref<256x256xbf16, #tpu.memory_space<vmem>>, vector<256x256xbf16>
    %cst_21 = arith.constant dense<0.000000e+00> : vector<8x256xf32>
    %29 = tpu.matmul %27, %28, %cst_21 {dimension_numbers = #tpu.dot_dimension_numbers<[1], [0], [0], [1], [0, 0, 1, 1], [], []>} : vector<8x256xbf16>, vector<256x256xbf16>, vector<8x256xf32> -> vector<8x256xf32>
    %c0_22 = arith.constant 0 : index
    %c0_23 = arith.constant 0 : index
    %30 = vector.load %arg10[%c0_22, %c0_23] : memref<1x256xf32, #tpu.memory_space<vmem>>, vector<1x256xf32>
    %31 = vector.broadcast %30 : vector<1x256xf32> to vector<8x256xf32>
    %32 = arith.addf %29, %31 : vector<8x256xf32>
    %33 = arith.negf %32 : vector<8x256xf32>
    %34 = math.exp %33 : vector<8x256xf32>
    %cst_24 = arith.constant 1.000000e+00 : f32
    %35 = vector.broadcast %cst_24 : f32 to vector<8x256xf32>
    %36 = arith.addf %35, %34 : vector<8x256xf32>
    %37 = arith.divf %35, %36 : vector<8x256xf32>
    %c0_25 = arith.constant 0 : index
    %c0_26 = arith.constant 0 : index
    %38 = vector.load %arg11[%c0_25, %c0_26] : memref<8x256xf32, #tpu.memory_space<vmem>>, vector<8x256xf32>
    tpu.vector_store %arg11[%c0_25, %c0_26], %37 {strides = array<i32>} : memref<8x256xf32, #tpu.memory_space<vmem>>, vector<8x256xf32>,
    %c0_27 = arith.constant 0 : index
    %c0_28 = arith.constant 0 : index
    %39 = vector.load %arg12[%c0_27, %c0_28] : memref<8x128xf32, #tpu.memory_space<vmem>>, vector<8x128xf32>
    tpu.vector_store %arg12[%c0_27, %c0_28], %13 {strides = array<i32>} : memref<8x128xf32, #tpu.memory_space<vmem>>, vector<8x128xf32>,
    return
  }
  func.func @transform_0(%arg0: i32) -> (i32, i32) {
    %c0_i32 = arith.constant 0 : i32
    %c0_i32_0 = arith.constant 0 : i32
    return %arg0, %c0_i32 : i32, i32
  }
  func.func @transform_1(%arg0: i32) -> (i32, i32) {
    %c0_i32 = arith.constant 0 : i32
    %c0_i32_0 = arith.constant 0 : i32
    return %arg0, %c0_i32 : i32, i32
  }
  func.func @transform_2(%arg0: i32) -> (i32, i32) {
    %c0_i32 = arith.constant 0 : i32
    %c0_i32_0 = arith.constant 0 : i32
    %c0_i32_1 = arith.constant 0 : i32
    return %c0_i32, %c0_i32_0 : i32, i32
  }
  func.func @transform_3(%arg0: i32) -> (i32, i32) {
    %c0_i32 = arith.constant 0 : i32
    %c0_i32_0 = arith.constant 0 : i32
    %c0_i32_1 = arith.constant 0 : i32
    return %c0_i32, %c0_i32_0 : i32, i32
  }
  func.func @transform_4(%arg0: i32) -> (i32, i32) {
    %c0_i32 = arith.constant 0 : i32
    %c0_i32_0 = arith.constant 0 : i32
    %c0_i32_1 = arith.constant 0 : i32
    return %c0_i32, %c0_i32_0 : i32, i32
  }
  func.func @transform_5(%arg0: i32) -> (i32, i32) {
    %c0_i32 = arith.constant 0 : i32
    %c0_i32_0 = arith.constant 0 : i32
    %c0_i32_1 = arith.constant 0 : i32
    return %c0_i32, %c0_i32_0 : i32, i32
  }
  func.func @transform_6(%arg0: i32) -> (i32, i32) {
    %c0_i32 = arith.constant 0 : i32
    %c0_i32_0 = arith.constant 0 : i32
    %c0_i32_1 = arith.constant 0 : i32
    return %c0_i32, %c0_i32_0 : i32, i32
  }
  func.func @transform_7(%arg0: i32) -> (i32, i32) {
    %c0_i32 = arith.constant 0 : i32
    %c0_i32_0 = arith.constant 0 : i32
    %c0_i32_1 = arith.constant 0 : i32
    return %c0_i32, %c0_i32_0 : i32, i32
  }
  func.func @transform_8(%arg0: i32) -> (i32, i32) {
    %c0_i32 = arith.constant 0 : i32
    %c0_i32_0 = arith.constant 0 : i32
    %c0_i32_1 = arith.constant 0 : i32
    return %c0_i32, %c0_i32_0 : i32, i32
  }
  func.func @transform_9(%arg0: i32) -> (i32, i32) {
    %c0_i32 = arith.constant 0 : i32
    %c0_i32_0 = arith.constant 0 : i32
    %c0_i32_1 = arith.constant 0 : i32
    return %c0_i32, %c0_i32_0 : i32, i32
  }
  func.func @transform_10(%arg0: i32) -> (i32, i32) {
    %c0_i32 = arith.constant 0 : i32
    %c0_i32_0 = arith.constant 0 : i32
    return %arg0, %c0_i32 : i32, i32
  }
  func.func @transform_11(%arg0: i32) -> (i32, i32) {
    %c0_i32 = arith.constant 0 : i32
    %c0_i32_0 = arith.constant 0 : i32
    return %arg0, %c0_i32 : i32, i32
  }
}

</mosaic_0001>

<llo_original>
// kernel: tpu_custom_call.1
$region0: #{tpu_custom_call.1}
  #allocation0 [shape = 'u32[]', space=smem, size = 0x4, offset = 0x4, fixed_abs, tag = 'smem constant byte address 0x4 - core index']
  #allocation1 [shape = 'u32[144,128]{1,0:T(1,128)}', space=vmem, size = 0x12000, scoped, tag = 'internal scratch']
  %s0 = inlined_call_operand.hbm [shape: bf16[8,256], index: 0, kind: input, shape index: {}]
  %s1 = inlined_call_operand.hbm [shape: bf16[8,128], index: 1, kind: input, shape index: {}]
  %s2 = inlined_call_operand.hbm [shape: bf16[256,256], index: 2, kind: input, shape index: {}]
  %s3 = inlined_call_operand.vmem [shape: f32[1,256], index: 3, kind: input, shape index: {}]
  %s4 = inlined_call_operand.hbm [shape: bf16[256,128], index: 4, kind: input, shape index: {}]
  %s5 = inlined_call_operand.vmem [shape: f32[1,128], index: 5, kind: input, shape index: {}]
  %s6 = inlined_call_operand.hbm [shape: bf16[128,256], index: 6, kind: input, shape index: {}]
  %s7 = inlined_call_operand.vmem [shape: f32[1,256], index: 7, kind: input, shape index: {}]
  %s8 = inlined_call_operand.hbm [shape: bf16[256,256], index: 8, kind: input, shape index: {}]
  %s9 = inlined_call_operand.vmem [shape: f32[1,256], index: 9, kind: input, shape index: {}]
  %s10 = inlined_call_operand.hbm [shape: f32[8,256], index: 10, kind: output, shape index: {0}]
  %s11 = inlined_call_operand.hbm [shape: f32[8,128], index: 11, kind: output, shape index: {1}]
  %12 = xla_tuple %s10, %s11
  %s13 = sld [smem:[#allocation0]]
  $region82: #{tpu_custom_call.1} parent=0
    _
  %s15 = ssub.s32 1, %s13
  %s16 = scalar_select 0, %s15, %s13
  $region1: #{tpu_custom_call.1} parent=0
    #allocation2 [shape = 'u8[4096]{0}', space=vmem, size = 0x1000, scoped, tag = 'input window, operand 0, single buffered']
    #allocation3 [shape = 's32[1]{0}', space=sflag, size = 0x4, scoped, tag = 'scoped memory for tpu_custom_call.1']
    #allocation4 [shape = 's32[1]{0}', space=sflag, size = 0x4, scoped, tag = 'scoped memory for tpu_custom_call.1']
    #allocation5 [shape = 'u8[2048]{0}', space=vmem, size = 0x800, scoped, tag = 'input window, operand 1, single buffered']
    #allocation6 [shape = 's32[1]{0}', space=sflag, size = 0x4, scoped, tag = 'scoped memory for tpu_custom_call.1']
    #allocation7 [shape = 'u8[131072]{0}', space=vmem, size = 0x20000, scoped, tag = 'input window, operand 2, single buffered']
    #allocation8 [shape = 'u8[65536]{0}', space=vmem, size = 0x10000, scoped, tag = 'input window, operand 4, single buffered']
    #allocation9 [shape = 's32[1]{0}', space=sflag, size = 0x4, scoped, tag = 'scoped memory for tpu_custom_call.1']
    #allocation10 [shape = 'u8[65536]{0}', space=vmem, size = 0x10000, scoped, tag = 'input window, operand 6, single buffered']
    #allocation11 [shape = 'u8[131072]{0}', space=vmem, size = 0x20000, scoped, tag = 'input window, operand 8, single buffered']
    #allocation12 [shape = 's32[1]{0}', space=sflag, size = 0x4, scoped, tag = 'scoped memory for tpu_custom_call.1']
    #allocation13 [shape = 'u8[8192]{0}', space=vmem, size = 0x2000, scoped, tag = 'output window, operand 0, single buffered']
    #allocation14 [shape = 'u8[4096]{0}', space=vmem, size = 0x1000, scoped, tag = 'output window, operand 1, single buffered']
    #allocation15 [shape = 's32[1]{0}', space=sflag, size = 0x4, scoped, tag = 'scoped memory for tpu_custom_call.1']
    %17 = vsyncpa [#allocation3], 0
    %18 = vsyncpa [#allocation6], 0
    %19 = vsyncpa [#allocation9], 0
    %20 = vsyncpa [#allocation12], 0
    %21 = vsyncpa [#allocation4], 0
    %22 = vsyncpa [#allocation15], 0
    // Predicated region
    $region2: #{tpu_custom_call.1} parent=1 // pred_check
      _
    $region3: #{tpu_custom_call.1} parent=1 // pred_check_branch
      %24 = sbr.rel (0) target = $region5
    $region4: #{tpu_custom_call.1} parent=1 // pred_region
      %s26 = ssub.s32 128, 128
      %27 = vsyncadd [#allocation3], %s26
      %s29 = sshll.u32 [#allocation2], 4
      %s30 = int_to_ptr.vmem [resolvable:$true] %s29
      %32 = dma.hbm_to_vmem [thread:$0]  %s0, 128, %s30, [#allocation3]
    $region5: #{tpu_custom_call.1} parent=1 // pred_fallthru
      _
    // Predicated region
    $region6: #{tpu_custom_call.1} parent=1 // pred_check
      _
    $region7: #{tpu_custom_call.1} parent=1 // pred_check_branch
      %34 = sbr.rel (0) target = $region9
    $region8: #{tpu_custom_call.1} parent=1 // pred_region
      %s36 = ssub.s32 64, 64
      %37 = vsyncadd [#allocation6], %s36
      %s39 = sshll.u32 [#allocation5], 4
      %s40 = int_to_ptr.vmem [resolvable:$true] %s39
      %42 = dma.hbm_to_vmem [thread:$0]  %s1, 64, %s40, [#allocation6]
    $region9: #{tpu_custom_call.1} parent=1 // pred_fallthru
      _
    // Predicated region
    $region10: #{tpu_custom_call.1} parent=1 // pred_check
      _
    $region11: #{tpu_custom_call.1} parent=1 // pred_check_branch
      %44 = sbr.rel (0) target = $region13
    $region12: #{tpu_custom_call.1} parent=1 // pred_region
      %s46 = ssub.s32 4096, 4096
      %47 = vsyncadd [#allocation6], %s46
      %s48 = sshll.u32 [#allocation7], 4
      %s49 = int_to_ptr.vmem [resolvable:$true] %s48
      %54 = dma.hbm_to_vmem [thread:$0]  %s2, 4096, %s49, [#allocation6], 128, 128, 8
    $region13: #{tpu_custom_call.1} parent=1 // pred_fallthru
      _
    // Predicated region
    $region14: #{tpu_custom_call.1} parent=1 // pred_check
      _
    $region15: #{tpu_custom_call.1} parent=1 // pred_check_branch
      %56 = sbr.rel (0) target = $region17
    $region16: #{tpu_custom_call.1} parent=1 // pred_region
      _
    $region17: #{tpu_custom_call.1} parent=1 // pred_fallthru
      _
    // Predicated region
    $region18: #{tpu_custom_call.1} parent=1 // pred_check
      _
    $region19: #{tpu_custom_call.1} parent=1 // pred_check_branch
      %58 = sbr.rel (0) target = $region21
    $region20: #{tpu_custom_call.1} parent=1 // pred_region
      %s60 = ssub.s32 2048, 2048
      %61 = vsyncadd [#allocation9], %s60
      %s62 = sshll.u32 [#allocation8], 4
      %s63 = int_to_ptr.vmem [resolvable:$true] %s62
      %68 = dma.hbm_to_vmem [thread:$0]  %s4, 2048, %s63, [#allocation9], 64, 64, 4
    $region21: #{tpu_custom_call.1} parent=1 // pred_fallthru
      _
    // Predicated region
    $region22: #{tpu_custom_call.1} parent=1 // pred_check
      _
    $region23: #{tpu_custom_call.1} parent=1 // pred_check_branch
      %70 = sbr.rel (0) target = $region25
    $region24: #{tpu_custom_call.1} parent=1 // pred_region
      _
    $region25: #{tpu_custom_call.1} parent=1 // pred_fallthru
      _
    // Predicated region
    $region26: #{tpu_custom_call.1} parent=1 // pred_check
      _
    $region27: #{tpu_custom_call.1} parent=1 // pred_check_branch
      %72 = sbr.rel (0) target = $region29
    $region28: #{tpu_custom_call.1} parent=1 // pred_region
      %s74 = ssub.s32 2048, 2048
      %75 = vsyncadd [#allocation9], %s74
      %s76 = sshll.u32 [#allocation10], 4
      %s77 = int_to_ptr.vmem [resolvable:$true] %s76
      %82 = dma.hbm_to_vmem [thread:$0]  %s6, 2048, %s77, [#allocation9], 128, 128, 8
    $region29: #{tpu_custom_call.1} parent=1 // pred_fallthru
      _
    // Predicated region
    $region30: #{tpu_custom_call.1} parent=1 // pred_check
      _
    $region31: #{tpu_custom_call.1} parent=1 // pred_check_branch
      %84 = sbr.rel (0) target = $region33
    $region32: #{tpu_custom_call.1} parent=1 // pred_region
      _
    $region33: #{tpu_custom_call.1} parent=1 // pred_fallthru
      _
    // Predicated region
    $region34: #{tpu_custom_call.1} parent=1 // pred_check
      _
    $region35: #{tpu_custom_call.1} parent=1 // pred_check_branch
      %86 = sbr.rel (0) target = $region37
    $region36: #{tpu_custom_call.1} parent=1 // pred_region
      %s88 = ssub.s32 4096, 4096
      %89 = vsyncadd [#allocation12], %s88
      %s90 = sshll.u32 [#allocation11], 4
      %s91 = int_to_ptr.vmem [resolvable:$true] %s90
      %96 = dma.hbm_to_vmem [thread:$0]  %s8, 4096, %s91, [#allocation12], 128, 128, 8
    $region37: #{tpu_custom_call.1} parent=1 // pred_fallthru
      _
    // Predicated region
    $region38: #{tpu_custom_call.1} parent=1 // pred_check
      _
    $region39: #{tpu_custom_call.1} parent=1 // pred_check_branch
      %98 = sbr.rel (0) target = $region41
    $region40: #{tpu_custom_call.1} parent=1 // pred_region
      _
    $region41: #{tpu_custom_call.1} parent=1 // pred_fallthru
      _
    // Predicated region
    $region42: #{tpu_custom_call.1} parent=1 // pred_check
      _
    $region43: #{tpu_custom_call.1} parent=1 // pred_check_branch
      %100 = sbr.rel (0) target = $region45
    $region44: #{tpu_custom_call.1} parent=1 // pred_region
      %101 = dma.done [#allocation3], 128
    $region45: #{tpu_custom_call.1} parent=1 // pred_fallthru
      _
    // Predicated region
    $region46: #{tpu_custom_call.1} parent=1 // pred_check
      _
    $region47: #{tpu_custom_call.1} parent=1 // pred_check_branch
      %103 = sbr.rel (0) target = $region49
    $region48: #{tpu_custom_call.1} parent=1 // pred_region
      %104 = dma.done [#allocation6], 64
    $region49: #{tpu_custom_call.1} parent=1 // pred_fallthru
      _
    // Predicated region
    $region50: #{tpu_custom_call.1} parent=1 // pred_check
      _
    $region51: #{tpu_custom_call.1} parent=1 // pred_check_branch
      %106 = sbr.rel (0) target = $region53
    $region52: #{tpu_custom_call.1} parent=1 // pred_region
      %107 = dma.done [#allocation6], 4096
    $region53: #{tpu_custom_call.1} parent=1 // pred_fallthru
      _
    // Predicated region
    $region54: #{tpu_custom_call.1} parent=1 // pred_check
      _
    $region55: #{tpu_custom_call.1} parent=1 // pred_check_branch
      %109 = sbr.rel (0) target = $region57
    $region56: #{tpu_custom_call.1} parent=1 // pred_region
      %110 = dma.done [#allocation9], 2048
    $region57: #{tpu_custom_call.1} parent=1 // pred_fallthru
      _
    // Predicated region
    $region58: #{tpu_custom_call.1} parent=1 // pred_check
      _
    $region59: #{tpu_custom_call.1} parent=1 // pred_check_branch
      %112 = sbr.rel (0) target = $region61
    $region60: #{tpu_custom_call.1} parent=1 // pred_region
      %113 = dma.done [#allocation9], 2048
    $region61: #{tpu_custom_call.1} parent=1 // pred_fallthru
      _
    // Predicated region
    $region62: #{tpu_custom_call.1} parent=1 // pred_check
      _
    $region63: #{tpu_custom_call.1} parent=1 // pred_check_branch
      %115 = sbr.rel (0) target = $region65
    $region64: #{tpu_custom_call.1} parent=1 // pred_region
      %116 = dma.done [#allocation12], 4096
    $region65: #{tpu_custom_call.1} parent=1 // pred_fallthru
      _
    %v118 = vld [vmem:[#allocation2] sm:$0xff]
    %v119 = vld [vmem:[#allocation7] sm:$0xff]
    %v120 = vld [vmem:[#allocation7 + $0x8] sm:$0xff]
    %v121 = vld [vmem:[#allocation7 + $0x10] sm:$0xff]
    %v122 = vld [vmem:[#allocation7 + $0x18] sm:$0xff]
    %v123 = vld [vmem:[#allocation7 + $0x20] sm:$0xff]
    %v124 = vld [vmem:[#allocation7 + $0x28] sm:$0xff]
    %v125 = vld [vmem:[#allocation7 + $0x30] sm:$0xff]
    %v126 = vld [vmem:[#allocation7 + $0x38] sm:$0xff]
    %v127 = vld [vmem:[#allocation7 + $0x40] sm:$0xff]
    %v128 = vld [vmem:[#allocation7 + $0x48] sm:$0xff]
    %v129 = vld [vmem:[#allocation7 + $0x50] sm:$0xff]
    %v130 = vld [vmem:[#allocation7 + $0x58] sm:$0xff]
    %v131 = vld [vmem:[#allocation7 + $0x60] sm:$0xff]
    %v132 = vld [vmem:[#allocation7 + $0x68] sm:$0xff]
    %v133 = vld [vmem:[#allocation7 + $0x70] sm:$0xff]
    %v134 = vld [vmem:[#allocation7 + $0x78] sm:$0xff]
    %v135 = vld [vmem:[#allocation7 + $0x80] sm:$0xff]
    %v136 = vld [vmem:[#allocation7 + $0x88] sm:$0xff]
    %v137 = vld [vmem:[#allocation7 + $0x90] sm:$0xff]
    %v138 = vld [vmem:[#allocation7 + $0x98] sm:$0xff]
    %v139 = vld [vmem:[#allocation7 + $0xa0] sm:$0xff]
    %v140 = vld [vmem:[#allocation7 + $0xa8] sm:$0xff]
    %v141 = vld [vmem:[#allocation7 + $0xb0] sm:$0xff]
    %v142 = vld [vmem:[#allocation7 + $0xb8] sm:$0xff]
    %v143 = vld [vmem:[#allocation7 + $0xc0] sm:$0xff]
    %v144 = vld [vmem:[#allocation7 + $0xc8] sm:$0xff]
    %v145 = vld [vmem:[#allocation7 + $0xd0] sm:$0xff]
    %v146 = vld [vmem:[#allocation7 + $0xd8] sm:$0xff]
    %v147 = vld [vmem:[#allocation7 + $0xe0] sm:$0xff]
    %v148 = vld [vmem:[#allocation7 + $0xe8] sm:$0xff]
    %v149 = vld [vmem:[#allocation7 + $0xf0] sm:$0xff]
    %v150 = vld [vmem:[#allocation7 + $0xf8] sm:$0xff]
    %v151 = vld [vmem:[%s3] sm:$0x3]
    %v153 = vlaneseq
    %v154 = vshrl.u32 %v153, 7
    %v155 = vsub.s32 0, %v154
    %v156 = vrot.slane %v151, %v155
    %v157 = vlaneseq
    %v158 = vshrl.u32 %v157, 7
    %v159 = vsub.s32 1, %v158
    %v160 = vrot.slane %v151, %v159
    %v164 = vunpack.c.l.b16 %v118
    %v165 = vunpack.c.h.b16 %v118
    %v166 = vpack.c.b16 %v164, %v164
    %v167 = vpack.c.b16 %v165, %v165
    %v202 = vunpack.c.l.b16 %v119
    %v203 = vunpack.c.h.b16 %v119
    %v204 = vunpack.c.l.b16 %v120
    %v205 = vunpack.c.h.b16 %v120
    %v206 = vunpack.c.l.b16 %v121
    %v207 = vunpack.c.h.b16 %v121
    %v208 = vunpack.c.l.b16 %v122
    %v209 = vunpack.c.h.b16 %v122
    %v210 = vunpack.c.l.b16 %v123
    %v211 = vunpack.c.h.b16 %v123
    %v212 = vunpack.c.l.b16 %v124
    %v213 = vunpack.c.h.b16 %v124
    %v214 = vunpack.c.l.b16 %v125
    %v215 = vunpack.c.h.b16 %v125
    %v216 = vunpack.c.l.b16 %v126
    %v217 = vunpack.c.h.b16 %v126
    %v218 = vunpack.c.l.b16 %v127
    %v219 = vunpack.c.h.b16 %v127
    %v220 = vunpack.c.l.b16 %v128
    %v221 = vunpack.c.h.b16 %v128
    %v222 = vunpack.c.l.b16 %v129
    %v223 = vunpack.c.h.b16 %v129
    %v224 = vunpack.c.l.b16 %v130
    %v225 = vunpack.c.h.b16 %v130
    %v226 = vunpack.c.l.b16 %v131
    %v227 = vunpack.c.h.b16 %v131
    %v228 = vunpack.c.l.b16 %v132
    %v229 = vunpack.c.h.b16 %v132
    %v230 = vunpack.c.l.b16 %v133
    %v231 = vunpack.c.h.b16 %v133
    %v232 = vunpack.c.l.b16 %v134
    %v233 = vunpack.c.h.b16 %v134
    %v234 = vunpack.c.l.b16 %v135
    %v235 = vunpack.c.h.b16 %v135
    %v236 = vunpack.c.l.b16 %v136
    %v237 = vunpack.c.h.b16 %v136
    %v238 = vunpack.c.l.b16 %v137
    %v239 = vunpack.c.h.b16 %v137
    %v240 = vunpack.c.l.b16 %v138
    %v241 = vunpack.c.h.b16 %v138
    %v242 = vunpack.c.l.b16 %v139
    %v243 = vunpack.c.h.b16 %v139
    %v244 = vunpack.c.l.b16 %v140
    %v245 = vunpack.c.h.b16 %v140
    %v246 = vunpack.c.l.b16 %v141
    %v247 = vunpack.c.h.b16 %v141
    %v248 = vunpack.c.l.b16 %v142
    %v249 = vunpack.c.h.b16 %v142
    %v250 = vunpack.c.l.b16 %v143
    %v251 = vunpack.c.h.b16 %v143
    %v252 = vunpack.c.l.b16 %v144
    %v253 = vunpack.c.h.b16 %v144
    %v254 = vunpack.c.l.b16 %v145
    %v255 = vunpack.c.h.b16 %v145
    %v256 = vunpack.c.l.b16 %v146
    %v257 = vunpack.c.h.b16 %v146
    %v258 = vunpack.c.l.b16 %v147
    %v259 = vunpack.c.h.b16 %v147
    %v260 = vunpack.c.l.b16 %v148
    %v261 = vunpack.c.h.b16 %v148
    %v262 = vunpack.c.l.b16 %v149
    %v263 = vunpack.c.h.b16 %v149
    %v264 = vunpack.c.l.b16 %v150
    %v265 = vunpack.c.h.b16 %v150
    %v266 = vpack.c.b16 %v204, %v202
    %v267 = vpack.c.b16 %v205, %v203
    %v268 = vpack.c.b16 %v208, %v206
    %v269 = vpack.c.b16 %v209, %v207
    %v270 = vpack.c.b16 %v212, %v210
    %v271 = vpack.c.b16 %v213, %v211
    %v272 = vpack.c.b16 %v216, %v214
    %v273 = vpack.c.b16 %v217, %v215
    %v274 = vpack.c.b16 %v220, %v218
    %v275 = vpack.c.b16 %v221, %v219
    %v276 = vpack.c.b16 %v224, %v222
    %v277 = vpack.c.b16 %v225, %v223
    %v278 = vpack.c.b16 %v228, %v226
    %v279 = vpack.c.b16 %v229, %v227
    %v280 = vpack.c.b16 %v232, %v230
    %v281 = vpack.c.b16 %v233, %v231
    %v282 = vpack.c.b16 %v236, %v234
    %v283 = vpack.c.b16 %v237, %v235
    %v284 = vpack.c.b16 %v240, %v238
    %v285 = vpack.c.b16 %v241, %v239
    %v286 = vpack.c.b16 %v244, %v242
    %v287 = vpack.c.b16 %v245, %v243
    %v288 = vpack.c.b16 %v248, %v246
    %v289 = vpack.c.b16 %v249, %v247
    %v290 = vpack.c.b16 %v252, %v250
    %v291 = vpack.c.b16 %v253, %v251
    %v292 = vpack.c.b16 %v256, %v254
    %v293 = vpack.c.b16 %v257, %v255
    %v294 = vpack.c.b16 %v260, %v258
    %v295 = vpack.c.b16 %v261, %v259
    %v296 = vpack.c.b16 %v264, %v262
    %v297 = vpack.c.b16 %v265, %v263
    %330 = vmatprep.subr.bf16.mxu0 %v281
    %331 = vmatpush1.bf16.msra.mxu0 %v280
    %332 = vmatprep.subr.bf16.mxu0 %v279
    %333 = vmatpush1.bf16.msra.mxu0 %v278
    %334 = vmatprep.subr.bf16.mxu0 %v277
    %335 = vmatpush1.bf16.msra.mxu0 %v276
    %336 = vmatprep.subr.bf16.mxu0 %v275
    %337 = vmatpush1.bf16.msra.mxu0 %v274
    %338 = vmatprep.subr.bf16.mxu0 %v273
    %339 = vmatpush1.bf16.msra.mxu0 %v272
    %340 = vmatprep.subr.bf16.mxu0 %v271
    %341 = vmatpush1.bf16.msra.mxu0 %v270
    %342 = vmatprep.subr.bf16.mxu0 %v269
    %343 = vmatpush1.bf16.msra.mxu0 %v268
    %344 = vmatprep.subr.bf16.mxu0 %v267
    %345 = vmatpush1.bf16.msra.mxu0 %v266
    %346 = vmatprep.subr.bf16.mxu0 %v297
    %347 = vmatpush2.bf16.msra.mxu0 %v296
    %348 = vmatprep.subr.bf16.mxu0 %v295
    %349 = vmatpush2.bf16.msra.mxu0 %v294
    %350 = vmatprep.subr.bf16.mxu0 %v293
    %351 = vmatpush2.bf16.msra.mxu0 %v292
    %352 = vmatprep.subr.bf16.mxu0 %v291
    %353 = vmatpush2.bf16.msra.mxu0 %v290
    %354 = vmatprep.subr.bf16.mxu0 %v289
    %355 = vmatpush2.bf16.msra.mxu0 %v288
    %356 = vmatprep.subr.bf16.mxu0 %v287
    %357 = vmatpush2.bf16.msra.mxu0 %v286
    %358 = vmatprep.subr.bf16.mxu0 %v285
    %359 = vmatpush2.bf16.msra.mxu0 %v284
    %360 = vmatprep.subr.bf16.mxu0 %v283
    %361 = vmatpush2.bf16.msra.mxu0 %v282
    %362 = vmatprep.mubr.bf16.mxu0 %v167
    %363 = vmatmul.mubr.bf16.gmra.mxu0 %v166
    %v364 = vpop.f32.mrf.mxu0
    %v365 = vadd.f32 %v156, %v364
    %v366 = vpop.f32.mrf.mxu0
    %v367 = vadd.f32 %v160, %v366
    %v368 = vpop.f32.mrf.mxu0
    %v369 = vpop.f32.mrf.mxu0
    %370 = vdwg.mxu0
    %v371 = vmax.f32 %v365, 0.0
    %v372 = vmax.f32 %v367, 0.0
    %v373 = vpack.c.bf16 %v371, %v371
    %v374 = vpack.c.bf16 %v372, %v372
    %v375 = vld [vmem:[#allocation8] sm:$0xf]
    %v376 = vld [vmem:[#allocation8 + $0x4] sm:$0xf]
    %v377 = vld [vmem:[#allocation8 + $0x8] sm:$0xf]
    %v378 = vld [vmem:[#allocation8 + $0xc] sm:$0xf]
    %v379 = vld [vmem:[#allocation8 + $0x10] sm:$0xf]
    %v380 = vld [vmem:[#allocation8 + $0x14] sm:$0xf]
    %v381 = vld [vmem:[#allocation8 + $0x18] sm:$0xf]
    %v382 = vld [vmem:[#allocation8 + $0x1c] sm:$0xf]
    %v383 = vld [vmem:[#allocation8 + $0x20] sm:$0xf]
    %v384 = vld [vmem:[#allocation8 + $0x24] sm:$0xf]
    %v385 = vld [vmem:[#allocation8 + $0x28] sm:$0xf]
    %v386 = vld [vmem:[#allocation8 + $0x2c] sm:$0xf]
    %v387 = vld [vmem:[#allocation8 + $0x30] sm:$0xf]
    %v388 = vld [vmem:[#allocation8 + $0x34] sm:$0xf]
    %v389 = vld [vmem:[#allocation8 + $0x38] sm:$0xf]
    %v390 = vld [vmem:[#allocation8 + $0x3c] sm:$0xf]
    %v391 = vld [vmem:[#allocation8 + $0x40] sm:$0xf]
    %v392 = vld [vmem:[#allocation8 + $0x44] sm:$0xf]
    %v393 = vld [vmem:[#allocation8 + $0x48] sm:$0xf]
    %v394 = vld [vmem:[#allocation8 + $0x4c] sm:$0xf]
    %v395 = vld [vmem:[#allocation8 + $0x50] sm:$0xf]
    %v396 = vld [vmem:[#allocation8 + $0x54] sm:$0xf]
    %v397 = vld [vmem:[#allocation8 + $0x58] sm:$0xf]
    %v398 = vld [vmem:[#allocation8 + $0x5c] sm:$0xf]
    %v399 = vld [vmem:[#allocation8 + $0x60] sm:$0xf]
    %v400 = vld [vmem:[#allocation8 + $0x64] sm:$0xf]
    %v401 = vld [vmem:[#allocation8 + $0x68] sm:$0xf]
    %v402 = vld [vmem:[#allocation8 + $0x6c] sm:$0xf]
    %v403 = vld [vmem:[#allocation8 + $0x70] sm:$0xf]
    %v404 = vld [vmem:[#allocation8 + $0x74] sm:$0xf]
    %v405 = vld [vmem:[#allocation8 + $0x78] sm:$0xf]
    %v406 = vld [vmem:[#allocation8 + $0x7c] sm:$0xf]
    %v407 = vld [vmem:[%s5] sm:$0x1]
    %v409 = vlaneseq
    %v410 = vshrl.u32 %v409, 7
    %v411 = vsub.s32 0, %v410
    %v412 = vrot.slane %v407, %v411
    %v446 = vunpack.c.l.b16 %v375
    %v447 = vunpack.c.l.b16 %v376
    %v448 = vunpack.c.l.b16 %v377
    %v449 = vunpack.c.l.b16 %v378
    %v450 = vunpack.c.l.b16 %v379
    %v451 = vunpack.c.l.b16 %v380
    %v452 = vunpack.c.l.b16 %v381
    %v453 = vunpack.c.l.b16 %v382
    %v454 = vunpack.c.l.b16 %v383
    %v455 = vunpack.c.l.b16 %v384
    %v456 = vunpack.c.l.b16 %v385
    %v457 = vunpack.c.l.b16 %v386
    %v458 = vunpack.c.l.b16 %v387
    %v459 = vunpack.c.l.b16 %v388
    %v460 = vunpack.c.l.b16 %v389
    %v461 = vunpack.c.l.b16 %v390
    %v462 = vunpack.c.l.b16 %v391
    %v463 = vunpack.c.l.b16 %v392
    %v464 = vunpack.c.l.b16 %v393
    %v465 = vunpack.c.l.b16 %v394
    %v466 = vunpack.c.l.b16 %v395
    %v467 = vunpack.c.l.b16 %v396
    %v468 = vunpack.c.l.b16 %v397
    %v469 = vunpack.c.l.b16 %v398
    %v470 = vunpack.c.l.b16 %v399
    %v471 = vunpack.c.l.b16 %v400
    %v472 = vunpack.c.l.b16 %v401
    %v473 = vunpack.c.l.b16 %v402
    %v474 = vunpack.c.l.b16 %v403
    %v475 = vunpack.c.l.b16 %v404
    %v476 = vunpack.c.l.b16 %v405
    %v477 = vunpack.c.l.b16 %v406
    %v478 = vpack.c.b16 %v447, %v446
    %v479 = vpack.c.b16 %v449, %v448
    %v480 = vpack.c.b16 %v451, %v450
    %v481 = vpack.c.b16 %v453, %v452
    %v482 = vpack.c.b16 %v455, %v454
    %v483 = vpack.c.b16 %v457, %v456
    %v484 = vpack.c.b16 %v459, %v458
    %v485 = vpack.c.b16 %v461, %v460
    %v486 = vpack.c.b16 %v463, %v462
    %v487 = vpack.c.b16 %v465, %v464
    %v488 = vpack.c.b16 %v467, %v466
    %v489 = vpack.c.b16 %v469, %v468
    %v490 = vpack.c.b16 %v471, %v470
    %v491 = vpack.c.b16 %v473, %v472
    %v492 = vpack.c.b16 %v475, %v474
    %v493 = vpack.c.b16 %v477, %v476
    %510 = vmatprep.subr.bf16.mxu0 0
    %511 = vmatpush1.bf16.msra.mxu0 %v485
    %512 = vmatprep.subr.bf16.mxu0 0
    %513 = vmatpush1.bf16.msra.mxu0 %v484
    %514 = vmatprep.subr.bf16.mxu0 0
    %515 = vmatpush1.bf16.msra.mxu0 %v483
    %516 = vmatprep.subr.bf16.mxu0 0
    %517 = vmatpush1.bf16.msra.mxu0 %v482
    %518 = vmatprep.subr.bf16.mxu0 0
    %519 = vmatpush1.bf16.msra.mxu0 %v481
    %520 = vmatprep.subr.bf16.mxu0 0
    %521 = vmatpush1.bf16.msra.mxu0 %v480
    %522 = vmatprep.subr.bf16.mxu0 0
    %523 = vmatpush1.bf16.msra.mxu0 %v479
    %524 = vmatprep.subr.bf16.mxu0 0
    %525 = vmatpush1.bf16.msra.mxu0 %v478
    %526 = vmatprep.subr.bf16.mxu0 0
    %527 = vmatpush2.bf16.msra.mxu0 %v493
    %528 = vmatprep.subr.bf16.mxu0 0
    %529 = vmatpush2.bf16.msra.mxu0 %v492
    %530 = vmatprep.subr.bf16.mxu0 0
    %531 = vmatpush2.bf16.msra.mxu0 %v491
    %532 = vmatprep.subr.bf16.mxu0 0
    %533 = vmatpush2.bf16.msra.mxu0 %v490
    %534 = vmatprep.subr.bf16.mxu0 0
    %535 = vmatpush2.bf16.msra.mxu0 %v489
    %536 = vmatprep.subr.bf16.mxu0 0
    %537 = vmatpush2.bf16.msra.mxu0 %v488
    %538 = vmatprep.subr.bf16.mxu0 0
    %539 = vmatpush2.bf16.msra.mxu0 %v487
    %540 = vmatprep.subr.bf16.mxu0 0
    %541 = vmatpush2.bf16.msra.mxu0 %v486
    %542 = vmatprep.mubr.bf16.mxu0 %v374
    %543 = vmatmul.mubr.bf16.gmra.mxu0 %v373
    %v544 = vpop.f32.mrf.mxu0
    %v545 = vadd.f32 %v412, %v544
    %v546 = vpop.f32.mrf.mxu0
    %v547 = vpop.f32.mrf.mxu0
    %v548 = vpop.f32.mrf.mxu0
    %549 = vdwg.mxu0
    %550 = vrot.lane.b32.xlu0 %v545, 108
    %v551 = vpop.permute.xlu0 %550
    %v552 = vld [vmem:[#allocation5] sm:$0xf]
    %v553 = vunpack.c.l.bf16 %v552
    %v554 = vmul.f32 %v551, %v553
    %v555 = vadd.f32 %v545, %v554
    %v556 = vpack.c.bf16 %v555, %v555
    %v557 = vld [vmem:[#allocation10] sm:$0xff]
    %v558 = vld [vmem:[#allocation10 + $0x8] sm:$0xff]
    %v559 = vld [vmem:[#allocation10 + $0x10] sm:$0xff]
    %v560 = vld [vmem:[#allocation10 + $0x18] sm:$0xff]
    %v561 = vld [vmem:[#allocation10 + $0x20] sm:$0xff]
    %v562 = vld [vmem:[#allocation10 + $0x28] sm:$0xff]
    %v563 = vld [vmem:[#allocation10 + $0x30] sm:$0xff]
    %v564 = vld [vmem:[#allocation10 + $0x38] sm:$0xff]
    %v565 = vld [vmem:[#allocation10 + $0x40] sm:$0xff]
    %v566 = vld [vmem:[#allocation10 + $0x48] sm:$0xff]
    %v567 = vld [vmem:[#allocation10 + $0x50] sm:$0xff]
    %v568 = vld [vmem:[#allocation10 + $0x58] sm:$0xff]
    %v569 = vld [vmem:[#allocation10 + $0x60] sm:$0xff]
    %v570 = vld [vmem:[#allocation10 + $0x68] sm:$0xff]
    %v571 = vld [vmem:[#allocation10 + $0x70] sm:$0xff]
    %v572 = vld [vmem:[#allocation10 + $0x78] sm:$0xff]
    %v573 = vld [vmem:[%s7] sm:$0x3]
    %v575 = vlaneseq
    %v576 = vshrl.u32 %v575, 7
    %v577 = vsub.s32 0, %v576
    %v578 = vrot.slane %v573, %v577
    %v579 = vlaneseq
    %v580 = vshrl.u32 %v579, 7
    %v581 = vsub.s32 1, %v580
    %v582 = vrot.slane %v573, %v581
    %v601 = vunpack.c.l.b16 %v557
    %v602 = vunpack.c.h.b16 %v557
    %v603 = vunpack.c.l.b16 %v558
    %v604 = vunpack.c.h.b16 %v558
    %v605 = vunpack.c.l.b16 %v559
    %v606 = vunpack.c.h.b16 %v559
    %v607 = vunpack.c.l.b16 %v560
    %v608 = vunpack.c.h.b16 %v560
    %v609 = vunpack.c.l.b16 %v561
    %v610 = vunpack.c.h.b16 %v561
    %v611 = vunpack.c.l.b16 %v562
    %v612 = vunpack.c.h.b16 %v562
    %v613 = vunpack.c.l.b16 %v563
    %v614 = vunpack.c.h.b16 %v563
    %v615 = vunpack.c.l.b16 %v564
    %v616 = vunpack.c.h.b16 %v564
    %v617 = vunpack.c.l.b16 %v565
    %v618 = vunpack.c.h.b16 %v565
    %v619 = vunpack.c.l.b16 %v566
    %v620 = vunpack.c.h.b16 %v566
    %v621 = vunpack.c.l.b16 %v567
    %v622 = vunpack.c.h.b16 %v567
    %v623 = vunpack.c.l.b16 %v568
    %v624 = vunpack.c.h.b16 %v568
    %v625 = vunpack.c.l.b16 %v569
    %v626 = vunpack.c.h.b16 %v569
    %v627 = vunpack.c.l.b16 %v570
    %v628 = vunpack.c.h.b16 %v570
    %v629 = vunpack.c.l.b16 %v571
    %v630 = vunpack.c.h.b16 %v571
    %v631 = vunpack.c.l.b16 %v572
    %v632 = vunpack.c.h.b16 %v572
    %v633 = vpack.c.b16 %v603, %v601
    %v634 = vpack.c.b16 %v604, %v602
    %v635 = vpack.c.b16 %v607, %v605
    %v636 = vpack.c.b16 %v608, %v606
    %v637 = vpack.c.b16 %v611, %v609
    %v638 = vpack.c.b16 %v612, %v610
    %v639 = vpack.c.b16 %v615, %v613
    %v640 = vpack.c.b16 %v616, %v614
    %v641 = vpack.c.b16 %v619, %v617
    %v642 = vpack.c.b16 %v620, %v618
    %v643 = vpack.c.b16 %v623, %v621
    %v644 = vpack.c.b16 %v624, %v622
    %v645 = vpack.c.b16 %v627, %v625
    %v646 = vpack.c.b16 %v628, %v626
    %v647 = vpack.c.b16 %v631, %v629
    %v648 = vpack.c.b16 %v632, %v630
    %665 = vmatprep.subr.bf16.mxu0 %v648
    %666 = vmatpush1.bf16.msra.mxu0 %v647
    %667 = vmatprep.subr.bf16.mxu0 %v646
    %668 = vmatpush1.bf16.msra.mxu0 %v645
    %669 = vmatprep.subr.bf16.mxu0 %v644
    %670 = vmatpush1.bf16.msra.mxu0 %v643
    %671 = vmatprep.subr.bf16.mxu0 %v642
    %672 = vmatpush1.bf16.msra.mxu0 %v641
    %673 = vmatprep.subr.bf16.mxu0 %v640
    %674 = vmatpush1.bf16.msra.mxu0 %v639
    %675 = vmatprep.subr.bf16.mxu0 %v638
    %676 = vmatpush1.bf16.msra.mxu0 %v637
    %677 = vmatprep.subr.bf16.mxu0 %v636
    %678 = vmatpush1.bf16.msra.mxu0 %v635
    %679 = vmatprep.subr.bf16.mxu0 %v634
    %680 = vmatpush1.bf16.msra.mxu0 %v633
    %681 = vmatprep.subr.bf16.mxu0 0
    %682 = vmatpush2.bf16.msra.mxu0 0
    %683 = vmatprep.subr.bf16.mxu0 0
    %684 = vmatpush2.bf16.msra.mxu0 0
    %685 = vmatprep.subr.bf16.mxu0 0
    %686 = vmatpush2.bf16.msra.mxu0 0
    %687 = vmatprep.subr.bf16.mxu0 0
    %688 = vmatpush2.bf16.msra.mxu0 0
    %689 = vmatprep.subr.bf16.mxu0 0
    %690 = vmatpush2.bf16.msra.mxu0 0
    %691 = vmatprep.subr.bf16.mxu0 0
    %692 = vmatpush2.bf16.msra.mxu0 0
    %693 = vmatprep.subr.bf16.mxu0 0
    %694 = vmatpush2.bf16.msra.mxu0 0
    %695 = vmatprep.subr.bf16.mxu0 0
    %696 = vmatpush2.bf16.msra.mxu0 0
    %697 = vmatprep.mubr.bf16.mxu0 0
    %698 = vmatmul.mubr.bf16.gmra.mxu0 %v556
    %v699 = vpop.f32.mrf.mxu0
    %v700 = vadd.f32 %v578, %v699
    %v701 = vpop.f32.mrf.mxu0
    %v702 = vadd.f32 %v582, %v701
    %v703 = vpop.f32.mrf.mxu0
    %v704 = vpop.f32.mrf.mxu0
    %705 = vdwg.mxu0
    %v706 = vmax.f32 %v700, 0.0
    %v707 = vmax.f32 %v702, 0.0
    %v708 = vpack.c.bf16 %v706, %v706
    %v709 = vpack.c.bf16 %v707, %v707
    %v710 = vld [vmem:[#allocation11] sm:$0xff]
    %v711 = vld [vmem:[#allocation11 + $0x8] sm:$0xff]
    %v712 = vld [vmem:[#allocation11 + $0x10] sm:$0xff]
    %v713 = vld [vmem:[#allocation11 + $0x18] sm:$0xff]
    %v714 = vld [vmem:[#allocation11 + $0x20] sm:$0xff]
    %v715 = vld [vmem:[#allocation11 + $0x28] sm:$0xff]
    %v716 = vld [vmem:[#allocation11 + $0x30] sm:$0xff]
    %v717 = vld [vmem:[#allocation11 + $0x38] sm:$0xff]
    %v718 = vld [vmem:[#allocation11 + $0x40] sm:$0xff]
    %v719 = vld [vmem:[#allocation11 + $0x48] sm:$0xff]
    %v720 = vld [vmem:[#allocation11 + $0x50] sm:$0xff]
    %v721 = vld [vmem:[#allocation11 + $0x58] sm:$0xff]
    %v722 = vld [vmem:[#allocation11 + $0x60] sm:$0xff]
    %v723 = vld [vmem:[#allocation11 + $0x68] sm:$0xff]
    %v724 = vld [vmem:[#allocation11 + $0x70] sm:$0xff]
    %v725 = vld [vmem:[#allocation11 + $0x78] sm:$0xff]
    %v726 = vld [vmem:[#allocation11 + $0x80] sm:$0xff]
    %v727 = vld [vmem:[#allocation11 + $0x88] sm:$0xff]
    %v728 = vld [vmem:[#allocation11 + $0x90] sm:$0xff]
    %v729 = vld [vmem:[#allocation11 + $0x98] sm:$0xff]
    %v730 = vld [vmem:[#allocation11 + $0xa0] sm:$0xff]
    %v731 = vld [vmem:[#allocation11 + $0xa8] sm:$0xff]
    %v732 = vld [vmem:[#allocation11 + $0xb0] sm:$0xff]
    %v733 = vld [vmem:[#allocation11 + $0xb8] sm:$0xff]
    %v734 = vld [vmem:[#allocation11 + $0xc0] sm:$0xff]
    %v735 = vld [vmem:[#allocation11 + $0xc8] sm:$0xff]
    %v736 = vld [vmem:[#allocation11 + $0xd0] sm:$0xff]
    %v737 = vld [vmem:[#allocation11 + $0xd8] sm:$0xff]
    %v738 = vld [vmem:[#allocation11 + $0xe0] sm:$0xff]
    %v739 = vld [vmem:[#allocation11 + $0xe8] sm:$0xff]
    %v740 = vld [vmem:[#allocation11 + $0xf0] sm:$0xff]
    %v741 = vld [vmem:[#allocation11 + $0xf8] sm:$0xff]
    %v742 = vld [vmem:[%s9] sm:$0x3]
    %v744 = vlaneseq
    %v745 = vshrl.u32 %v744, 7
    %v746 = vsub.s32 0, %v745
    %v747 = vrot.slane %v742, %v746
    %v748 = vlaneseq
    %v749 = vshrl.u32 %v748, 7
    %v750 = vsub.s32 1, %v749
    %v751 = vrot.slane %v742, %v750
    %v786 = vunpack.c.l.b16 %v710
    %v787 = vunpack.c.h.b16 %v710
    %v788 = vunpack.c.l.b16 %v711
    %v789 = vunpack.c.h.b16 %v711
    %v790 = vunpack.c.l.b16 %v712
    %v791 = vunpack.c.h.b16 %v712
    %v792 = vunpack.c.l.b16 %v713
    %v793 = vunpack.c.h.b16 %v713
    %v794 = vunpack.c.l.b16 %v714
    %v795 = vunpack.c.h.b16 %v714
    %v796 = vunpack.c.l.b16 %v715
    %v797 = vunpack.c.h.b16 %v715
    %v798 = vunpack.c.l.b16 %v716
    %v799 = vunpack.c.h.b16 %v716
    %v800 = vunpack.c.l.b16 %v717
    %v801 = vunpack.c.h.b16 %v717
    %v802 = vunpack.c.l.b16 %v718
    %v803 = vunpack.c.h.b16 %v718
    %v804 = vunpack.c.l.b16 %v719
    %v805 = vunpack.c.h.b16 %v719
    %v806 = vunpack.c.l.b16 %v720
    %v807 = vunpack.c.h.b16 %v720
    %v808 = vunpack.c.l.b16 %v721
    %v809 = vunpack.c.h.b16 %v721
    %v810 = vunpack.c.l.b16 %v722
    %v811 = vunpack.c.h.b16 %v722
    %v812 = vunpack.c.l.b16 %v723
    %v813 = vunpack.c.h.b16 %v723
    %v814 = vunpack.c.l.b16 %v724
    %v815 = vunpack.c.h.b16 %v724
    %v816 = vunpack.c.l.b16 %v725
    %v817 = vunpack.c.h.b16 %v725
    %v818 = vunpack.c.l.b16 %v726
    %v819 = vunpack.c.h.b16 %v726
    %v820 = vunpack.c.l.b16 %v727
    %v821 = vunpack.c.h.b16 %v727
    %v822 = vunpack.c.l.b16 %v728
    %v823 = vunpack.c.h.b16 %v728
    %v824 = vunpack.c.l.b16 %v729
    %v825 = vunpack.c.h.b16 %v729
    %v826 = vunpack.c.l.b16 %v730
    %v827 = vunpack.c.h.b16 %v730
    %v828 = vunpack.c.l.b16 %v731
    %v829 = vunpack.c.h.b16 %v731
    %v830 = vunpack.c.l.b16 %v732
    %v831 = vunpack.c.h.b16 %v732
    %v832 = vunpack.c.l.b16 %v733
    %v833 = vunpack.c.h.b16 %v733
    %v834 = vunpack.c.l.b16 %v734
    %v835 = vunpack.c.h.b16 %v734
    %v836 = vunpack.c.l.b16 %v735
    %v837 = vunpack.c.h.b16 %v735
    %v838 = vunpack.c.l.b16 %v736
    %v839 = vunpack.c.h.b16 %v736
    %v840 = vunpack.c.l.b16 %v737
    %v841 = vunpack.c.h.b16 %v737
    %v842 = vunpack.c.l.b16 %v738
    %v843 = vunpack.c.h.b16 %v738
    %v844 = vunpack.c.l.b16 %v739
    %v845 = vunpack.c.h.b16 %v739
    %v846 = vunpack.c.l.b16 %v740
    %v847 = vunpack.c.h.b16 %v740
    %v848 = vunpack.c.l.b16 %v741
    %v849 = vunpack.c.h.b16 %v741
    %v850 = vpack.c.b16 %v788, %v786
    %v851 = vpack.c.b16 %v789, %v787
    %v852 = vpack.c.b16 %v792, %v790
    %v853 = vpack.c.b16 %v793, %v791
    %v854 = vpack.c.b16 %v796, %v794
    %v855 = vpack.c.b16 %v797, %v795
    %v856 = vpack.c.b16 %v800, %v798
    %v857 = vpack.c.b16 %v801, %v799
    %v858 = vpack.c.b16 %v804, %v802
    %v859 = vpack.c.b16 %v805, %v803
    %v860 = vpack.c.b16 %v808, %v806
    %v861 = vpack.c.b16 %v809, %v807
    %v862 = vpack.c.b16 %v812, %v810
    %v863 = vpack.c.b16 %v813, %v811
    %v864 = vpack.c.b16 %v816, %v814
    %v865 = vpack.c.b16 %v817, %v815
    %v866 = vpack.c.b16 %v820, %v818
    %v867 = vpack.c.b16 %v821, %v819
    %v868 = vpack.c.b16 %v824, %v822
    %v869 = vpack.c.b16 %v825, %v823
    %v870 = vpack.c.b16 %v828, %v826
    %v871 = vpack.c.b16 %v829, %v827
    %v872 = vpack.c.b16 %v832, %v830
    %v873 = vpack.c.b16 %v833, %v831
    %v874 = vpack.c.b16 %v836, %v834
    %v875 = vpack.c.b16 %v837, %v835
    %v876 = vpack.c.b16 %v840, %v838
    %v877 = vpack.c.b16 %v841, %v839
    %v878 = vpack.c.b16 %v844, %v842
    %v879 = vpack.c.b16 %v845, %v843
    %v880 = vpack.c.b16 %v848, %v846
    %v881 = vpack.c.b16 %v849, %v847
    %914 = vmatprep.subr.bf16.mxu0 %v865
    %915 = vmatpush1.bf16.msra.mxu0 %v864
    %916 = vmatprep.subr.bf16.mxu0 %v863
    %917 = vmatpush1.bf16.msra.mxu0 %v862
    %918 = vmatprep.subr.bf16.mxu0 %v861
    %919 = vmatpush1.bf16.msra.mxu0 %v860
    %920 = vmatprep.subr.bf16.mxu0 %v859
    %921 = vmatpush1.bf16.msra.mxu0 %v858
    %922 = vmatprep.subr.bf16.mxu0 %v857
    %923 = vmatpush1.bf16.msra.mxu0 %v856
    %924 = vmatprep.subr.bf16.mxu0 %v855
    %925 = vmatpush1.bf16.msra.mxu0 %v854
    %926 = vmatprep.subr.bf16.mxu0 %v853
    %927 = vmatpush1.bf16.msra.mxu0 %v852
    %928 = vmatprep.subr.bf16.mxu0 %v851
    %929 = vmatpush1.bf16.msra.mxu0 %v850
    %930 = vmatprep.subr.bf16.mxu0 %v881
    %931 = vmatpush2.bf16.msra.mxu0 %v880
    %932 = vmatprep.subr.bf16.mxu0 %v879
    %933 = vmatpush2.bf16.msra.mxu0 %v878
    %934 = vmatprep.subr.bf16.mxu0 %v877
    %935 = vmatpush2.bf16.msra.mxu0 %v876
    %936 = vmatprep.subr.bf16.mxu0 %v875
    %937 = vmatpush2.bf16.msra.mxu0 %v874
    %938 = vmatprep.subr.bf16.mxu0 %v873
    %939 = vmatpush2.bf16.msra.mxu0 %v872
    %940 = vmatprep.subr.bf16.mxu0 %v871
    %941 = vmatpush2.bf16.msra.mxu0 %v870
    %942 = vmatprep.subr.bf16.mxu0 %v869
    %943 = vmatpush2.bf16.msra.mxu0 %v868
    %944 = vmatprep.subr.bf16.mxu0 %v867
    %945 = vmatpush2.bf16.msra.mxu0 %v866
    %946 = vmatprep.mubr.bf16.mxu0 %v709
    %947 = vmatmul.mubr.bf16.gmra.mxu0 %v708
    %v948 = vpop.f32.mrf.mxu0
    %v949 = vadd.f32 %v747, %v948
    %v950 = vpop.f32.mrf.mxu0
    %v951 = vadd.f32 %v751, %v950
    %v952 = vpop.f32.mrf.mxu0
    %v953 = vpop.f32.mrf.mxu0
    %954 = vdwg.mxu0
    %v955 = vxor.u32 %v949, 2147483648
    %v956 = vxor.u32 %v951, 2147483648
    %v957 = vmul.f32 %v955, 1.442695
    %v958 = vpow.pop %v957
    %v959 = vmul.f32 %v956, 1.442695
    %v960 = vpow.pop %v959
    %v961 = vadd.f32 %v958, 1.0
    %v962 = vadd.f32 %v960, 1.0
    %v963 = vrcp.pop %v961
    %v964 = vmul.f32 1.0, %v963
    %v965 = vrcp.pop %v962
    %v966 = vmul.f32 1.0, %v965
    %967 = vst [vmem:[#allocation13] sm:$0xff] %v964
    %968 = vst [vmem:[#allocation13 + $0x8] sm:$0xff] %v966
    %969 = vst [vmem:[#allocation14] sm:$0xff] %v545
    // Predicated region
    $region66: #{tpu_custom_call.1} parent=1 // pred_check
      _
    $region67: #{tpu_custom_call.1} parent=1 // pred_check_branch
      %971 = sbr.rel (0) target = $region69
    $region68: #{tpu_custom_call.1} parent=1 // pred_region
      %s973 = ssub.s32 256, 256
      %974 = vsyncadd [#allocation4], %s973
      %s976 = sshll.u32 [#allocation13], 4
      %s977 = int_to_ptr.vmem [resolvable:$true] %s976
      %979 = dma.vmem_to_hbm [thread:$0]  %s977, 256, %s10, [#allocation4]
    $region69: #{tpu_custom_call.1} parent=1 // pred_fallthru
      _
    // Predicated region
    $region70: #{tpu_custom_call.1} parent=1 // pred_check
      _
    $region71: #{tpu_custom_call.1} parent=1 // pred_check_branch
      %981 = sbr.rel (0) target = $region73
    $region72: #{tpu_custom_call.1} parent=1 // pred_region
      %s983 = ssub.s32 128, 128
      %984 = vsyncadd [#allocation15], %s983
      %s986 = sshll.u32 [#allocation14], 4
      %s987 = int_to_ptr.vmem [resolvable:$true] %s986
      %989 = dma.vmem_to_hbm [thread:$0]  %s987, 128, %s11, [#allocation15]
    $region73: #{tpu_custom_call.1} parent=1 // pred_fallthru
      _
    // Predicated region
    $region74: #{tpu_custom_call.1} parent=1 // pred_check
      _
    $region75: #{tpu_custom_call.1} parent=1 // pred_check_branch
      %991 = sbr.rel (0) target = $region77
    $region76: #{tpu_custom_call.1} parent=1 // pred_region
      %992 = dma.done [#allocation4], 256
    $region77: #{tpu_custom_call.1} parent=1 // pred_fallthru
      _
    // Predicated region
    $region78: #{tpu_custom_call.1} parent=1 // pred_check
      _
    $region79: #{tpu_custom_call.1} parent=1 // pred_check_branch
      %994 = sbr.rel (0) target = $region81
    $region80: #{tpu_custom_call.1} parent=1 // pred_region
      %995 = dma.done [#allocation15], 128
    $region81: #{tpu_custom_call.1} parent=1 // pred_fallthru
      _
    %996 = vsyncpa [#allocation3], 1
    %997 = vsyncpa [#allocation6], 1
    %998 = vsyncpa [#allocation9], 1
    %999 = vsyncpa [#allocation12], 1
    %1000 = vsyncpa [#allocation4], 1
    %1001 = vsyncpa [#allocation15], 1

</llo_original>
